<compile_context>
chip_gen: v7x
topology: tpu7x:2x2x1
jax: 0.10.0
libtpu: 0.0.40
codegen_flags: <defaults>
</compile_context>

<pallas_src>
import jax
import jax.numpy as jnp
from jax.experimental import pallas as pl
from jax.experimental.pallas import tpu as pltpu


# ----------------------------- Pallas kernel --------------------------------

def _conv_bn_relu_kernel(w_ref, a_ref, shift_ref, o_ref):
    # w_ref:     (COUT, K)       bf16, conv weight with BN scale pre-folded
    # a_ref:     (K, T_HW)       bf16, im2col patches tile (one image's slab)
    # shift_ref: (COUT, 1)       f32,  folded BN shift = (bias - mean)*scale + beta
    # o_ref:     (COUT, T_HW)    bf16, lane-dense output tile (N-major layout)
    acc = jnp.dot(w_ref[...], a_ref[...], preferred_element_type=jnp.float32)
    o_ref[...] = jnp.maximum(acc + shift_ref[...], 0.0).astype(o_ref.dtype)


def _pick_tile_hw(hw, cap=2048):
    """Largest multiple-of-128 divisor of hw, capped (sweepable up to 8192)."""
    best, t = None, 128
    while t <= min(hw, cap):
        if hw % t == 0:
            best = t
        t += 128
    return best


def conv_bn_relu_pallas(w_scaled, patches_t, shift, n, hw):
    """w_scaled: (COUT, K) bf16, patches_t: (K, N*HW) bf16 (M is n-major),
    shift: (COUT, 1) f32.  Returns (N, COUT, HW) bf16."""
    cout, k = w_scaled.shape
    assert patches_t.shape == (k, n * hw)

    tile_hw = _pick_tile_hw(hw)
    if tile_hw is None:
        # TODO(synk): ragged HW tail (HW % 128 != 0) would need a masked last
        # block; not needed for this module's canonical shapes.
        raise NotImplementedError("HW must be a multiple of 128")
    blocks_per_image = hw // tile_hw
    grid = (n, blocks_per_image)

    bytes_accessed = (patches_t.size * patches_t.dtype.itemsize
                      + w_scaled.size * w_scaled.dtype.itemsize
                      + shift.size * shift.dtype.itemsize
                      + n * cout * hw * 2)                      # bf16 output

    return pl.pallas_call(
        _conv_bn_relu_kernel,
        out_shape=jax.ShapeDtypeStruct((n, cout, hw), jnp.bfloat16),
        grid_spec=pltpu.PrefetchScalarGridSpec(
            num_scalar_prefetch=0,
            grid=grid,
            in_specs=[
                pl.BlockSpec((cout, k), lambda i, j: (0, 0)),      # weight (resident)
                pl.BlockSpec((k, tile_hw),                         # patches tile
                             lambda i, j: (0, i * blocks_per_image + j)),
                pl.BlockSpec((cout, 1), lambda i, j: (0, 0)),      # BN shift (resident)
            ],
            out_specs=pl.BlockSpec((None, cout, tile_hw),
                                   lambda i, j: (i, 0, j)),
        ),
        compiler_params=pltpu.CompilerParams(
            dimension_semantics=("parallel", "parallel"),
            # Allow the im2col producer fusion to feed the patches input DMA
            # directly instead of materializing the 9x (K, M) array in HBM.
            allow_input_fusion=[False, True, False],
        ),
        cost_estimate=pl.CostEstimate(
            flops=2 * n * hw * k * cout,
            transcendentals=0,
            bytes_accessed=bytes_accessed),
    )(w_scaled, patches_t, shift)


# ------------------------------ JAX glue (jitted) ----------------------------

@jax.jit
def _dist_module_forward(x, weight, bias, gamma, beta, mean, var, eps):
    """Conv2d(3x3, pad=1) + BN(eval) + ReLU, NCHW in / NCHW out (bf16)."""
    n, c, h, w = x.shape
    cout = weight.shape[0]

    # Fold BN into the conv: scale into weights, shift as a per-channel add.
    scale = gamma * jax.lax.rsqrt(var + eps)                       # (COUT,)
    shift = ((bias - mean) * scale + beta).reshape(cout, 1)        # (COUT, 1) f32
    w_mat = weight.reshape(cout, c * 9)                            # K order: (c, kh, kw)
    w_scaled = (w_mat * scale[:, None]).astype(jnp.bfloat16)

    # im2col in transposed (K, M) layout with M laid out n-major (n, h, w).
    # With allow_input_fusion on the patches operand this chain feeds the
    # pallas_call input DMA rather than becoming a 9x HBM array.
    x_pad = jnp.pad(x, ((0, 0), (0, 0), (1, 1), (1, 1)))
    taps = jnp.stack(
        [x_pad[:, :, kh:kh + h, kw:kw + w] for kh in range(3) for kw in range(3)],
        axis=0)                                                    # (9, N, C, H, W)
    patches_t = jnp.transpose(taps, (2, 0, 1, 3, 4)).reshape(c * 9, n * h * w)
    patches_t = patches_t.astype(jnp.bfloat16)                     # (K, N*HW)

    out = conv_bn_relu_pallas(w_scaled, patches_t, shift, n, h * w)  # (N, COUT, HW)
    return out.reshape(n, cout, h, w)          # free reshape — no XLA transpose


class DistModulePallas:
    """Single-device DistModule: forward == wrapped module's forward.

    Wrapped module: Conv2d(C_in, C_out, 3, padding=1) + BatchNorm2d (eval,
    running buffers) + ReLU.
    """

    def __init__(self, c_in, c_out, key, bn_method=0, world_size=1):
        self.world_size = world_size
        # world_size == 1 => bn_method forced to 0 (buffer broadcast is a no-op)
        self.bn_method = bn_method if world_size > 1 else 0
        # TODO(synk): dist.broadcast / dist.all_reduce have no single-device
        # Pallas equivalent; at world_size == 1 they are exact no-ops.

        k_w, k_b, k_g, k_be, k_m, k_v = jax.random.split(key, 6)
        self.c_in, self.c_out = c_in, c_out
        self.weight = 0.1 * jax.random.normal(k_w, (c_out, c_in, 3, 3), jnp.float32)
        self.bias = 0.1 * jax.random.normal(k_b, (c_out,), jnp.float32)
        self.bn_gamma = 1.0 + 0.05 * jax.random.normal(k_g, (c_out,), jnp.float32)
        self.bn_beta = 0.05 * jax.random.normal(k_be, (c_out,), jnp.float32)
        self.bn_mean = 0.05 * jax.random.normal(k_m, (c_out,), jnp.float32)
        self.bn_var = jnp.abs(1.0 + 0.05 * jax.random.normal(k_v, (c_out,), jnp.float32))
        self.eps = 1e-5

    def __call__(self, x):
        # forward(): broadcast_buffers(...) is a no-op (bn_method == 0),
        # then run the wrapped module.
        assert x.shape[1] == self.c_in
        return _dist_module_forward(
            x, self.weight, self.bias, self.bn_gamma, self.bn_beta,
            self.bn_mean, self.bn_var, jnp.float32(self.eps))


# --------------------------- pure-JAX reference -------------------------------

def _reference(x, m: DistModulePallas):
    y = jax.lax.conv_general_dilated(
        x, m.weight, window_strides=(1, 1), padding=((1, 1), (1, 1)),
        dimension_numbers=("NCHW", "OIHW", "NCHW"))
    y = y + m.bias.reshape(1, -1, 1, 1)
    scale = (m.bn_gamma / jnp.sqrt(m.bn_var + m.eps)).reshape(1, -1, 1, 1)
    shift = (m.bn_beta - m.bn_mean * m.bn_gamma / jnp.sqrt(m.bn_var + m.eps)).reshape(1, -1, 1, 1)
    return jnp.maximum(y * scale + shift, 0.0)


if __name__ == "__main__":
    key = jax.random.PRNGKey(0)
    k_x, k_p = jax.random.split(key)

    N, C, H, W = 2, 4, 16, 16
    x = jax.random.normal(k_x, (N, C, H, W), jnp.float32)   # NCHW, like PyTorch

    model = DistModulePallas(c_in=C, c_out=8, key=k_p, bn_method=0, world_size=1)

    out = jax.block_until_ready(model(x))
    ref = jax.block_until_ready(_reference(x, model))

    assert out.shape == (N, 8, H, W)
    assert out.dtype == jnp.bfloat16
    # Kernel feeds the MXU bf16 inputs (f32 accumulation) and stores bf16, so
    # the tolerance covers bf16 input rounding (~1e-2) plus the bf16 output
    # cast (~1e-2 at |out| ~ 2.5).
    err = jnp.max(jnp.abs(out.astype(jnp.float32) - ref))
    assert err < 6e-2, float(err)

    print("KERNEL_OK")
</pallas_src>

<mosaic_0001>
module attributes {stable_mosaic.version = 11 : i64} {
  func.func @_conv_bn_relu_kernel(%arg0: i32, %arg1: i32, %arg2: memref<8x36xbf16, #tpu.memory_space<vmem>>, %arg3: memref<36x256xbf16, #tpu.memory_space<vmem>>, %arg4: memref<8x1xf32, #tpu.memory_space<vmem>>, %arg5: memref<1x8x256xbf16, #tpu.memory_space<vmem>>) attributes {dimension_semantics = [#tpu.dimension_semantics<parallel>, #tpu.dimension_semantics<parallel>], iteration_bounds = array<i64: 2, 1>, scalar_prefetch = 0 : i64, scratch_operands = 0 : i64, tpu.core_type = #tpu.core_type<tc>, window_params = [{pipeline_mode = #tpu.pipeline_mode<synchronous>, transform_indices = @transform_0, window_bounds = array<i64: 8, 36>}, {transform_indices = @transform_1, window_bounds = array<i64: 36, 256>}, {pipeline_mode = #tpu.pipeline_mode<synchronous>, transform_indices = @transform_2, window_bounds = array<i64: 8, 1>}, {transform_indices = @transform_3, window_bounds = array<i64: 1, 8, 256>}]} {
    %c0 = arith.constant 0 : index
    %c0_0 = arith.constant 0 : index
    %0 = vector.load %arg2[%c0, %c0_0] : memref<8x36xbf16, #tpu.memory_space<vmem>>, vector<8x36xbf16>
    %c0_1 = arith.constant 0 : index
    %c0_2 = arith.constant 0 : index
    %1 = vector.load %arg3[%c0_1, %c0_2] : memref<36x256xbf16, #tpu.memory_space<vmem>>, vector<36x256xbf16>
    %cst = arith.constant dense<0.000000e+00> : vector<8x256xf32>
    %2 = tpu.matmul %0, %1, %cst {dimension_numbers = #tpu.dot_dimension_numbers<[1], [0], [0], [1], [0, 0, 1, 1], [], []>} : vector<8x36xbf16>, vector<36x256xbf16>, vector<8x256xf32> -> vector<8x256xf32>
    %c0_3 = arith.constant 0 : index
    %c0_4 = arith.constant 0 : index
    %3 = vector.load %arg4[%c0_3, %c0_4] : memref<8x1xf32, #tpu.memory_space<vmem>>, vector<8x1xf32>
    %4 = vector.broadcast %3 : vector<8x1xf32> to vector<8x256xf32>
    %5 = arith.addf %2, %4 : vector<8x256xf32>
    %cst_5 = arith.constant 0.000000e+00 : f32
    %6 = vector.broadcast %cst_5 : f32 to vector<8x256xf32>
    %7 = arith.maximumf %5, %6 : vector<8x256xf32>
    %8 = arith.truncf %7 : vector<8x256xf32> to vector<8x256xbf16>
    %c0_6 = arith.constant 0 : index
    %c0_7 = arith.constant 0 : index
    %c0_8 = arith.constant 0 : index
    %9 = vector.load %arg5[%c0_6, %c0_7, %c0_8] : memref<1x8x256xbf16, #tpu.memory_space<vmem>>, vector<1x8x256xbf16>
    %10 = vector.shape_cast %9 : vector<1x8x256xbf16> to vector<8x256xbf16>
    %11 = vector.shape_cast %8 : vector<8x256xbf16> to vector<1x8x256xbf16>
    tpu.vector_store %arg5[%c0_6, %c0_7, %c0_8], %11 {strides = array<i32>} : memref<1x8x256xbf16, #tpu.memory_space<vmem>>, vector<1x8x256xbf16>,
    return
  }
  func.func @transform_0(%arg0: i32, %arg1: i32) -> (i32, i32) {
    %c0_i32 = arith.constant 0 : i32
    %c0_i32_0 = arith.constant 0 : i32
    %c0_i32_1 = arith.constant 0 : i32
    return %c0_i32, %c0_i32_0 : i32, i32
  }
  func.func @transform_1(%arg0: i32, %arg1: i32) -> (i32, i32) {
    %c1_i32 = arith.constant 1 : i32
    %0 = arith.muli %arg0, %c1_i32 : i32
    %1 = arith.addi %0, %arg1 : i32
    %c0_i32 = arith.constant 0 : i32
    %c0_i32_0 = arith.constant 0 : i32
    return %c0_i32, %1 : i32, i32
  }
  func.func @transform_2(%arg0: i32, %arg1: i32) -> (i32, i32) {
    %c0_i32 = arith.constant 0 : i32
    %c0_i32_0 = arith.constant 0 : i32
    %c0_i32_1 = arith.constant 0 : i32
    return %c0_i32, %c0_i32_0 : i32, i32
  }
  func.func @transform_3(%arg0: i32, %arg1: i32) -> (i32, i32, i32) {
    %c0_i32 = arith.constant 0 : i32
    %c0_i32_0 = arith.constant 0 : i32
    return %arg0, %c0_i32, %arg1 : i32, i32, i32
  }
}

</mosaic_0001>

<llo_original>
// kernel: _dist_module_forward.1
$region0: #{_dist_module_forward.1}
  #allocation0 [shape = 'u32[]', space=smem, size = 0x4, offset = 0x4, fixed_abs, tag = 'smem constant byte address 0x4 - core index']
  #allocation1 [shape = 'u32[144,128]{1,0:T(1,128)}', space=vmem, size = 0x12000, scoped, tag = 'internal scratch']
  %s0 = inlined_call_operand.vmem [shape: bf16[8,36], index: 0, kind: input, shape index: {}]
  %s1 = inlined_call_operand.vmem [shape: bf16[36,512], index: 1, kind: input, shape index: {}]
  %s2 = inlined_call_operand.vmem [shape: f32[8,1], index: 2, kind: input, shape index: {}]
  %s3 = inlined_call_operand.vmem [shape: bf16[2,8,256], index: 3, kind: output, shape index: {}]
  %s4 = sld [smem:[#allocation0]]
  $region83: #{_dist_module_forward.1} parent=0
    _
  %s6 = ssub.s32 1, %s4
  %s7 = scalar_select 0, %s6, %s4
  $region1: #{_dist_module_forward.1} parent=0
    #allocation2 [shape = 'u8[40960]{0}', space=vmem, size = 0xa000, scoped, tag = 'input window, operand 1']
    loop: start=0, step=1, limit=4
    $region2: #{_dist_module_forward.1} parent=1 // loop_pre_header
      _
    $region3: #{_dist_module_forward.1} parent=1 // loop_header
      %s9 = sphi 0, %s13
      %p10 = scmp.ge.s32.totalorder %s9, 4
      %s16 = sphi 0, %s28
      %s17 = sphi 0, %s24
      %s18 = sphi 0, %s16
      %s19 = sphi 0, %s17
      %s20 = sphi 0, %s18
      %s21 = sphi 0, %s19
      %s29 = sphi 0, %s29
      %s31 = sphi 0, %s29
      %s32 = sphi 0, %s31
      %s46 = sphi 0, %s32
      %s54 = sphi 0, %s56
      %s57 = sphi 0, %s54
      %s58 = sphi 0, %s57
      %s74 = sphi 0, %s58
      %s78 = sphi 0, %s78
      %s80 = sphi 0, %s78
      %s81 = sphi 0, %s80
      %s95 = sphi 0, %s81
      %s103 = sphi 0, %s105
      %s106 = sphi 0, %s103
      %s107 = sphi 0, %s106
      %s123 = sphi 0, %s107
    $region4: #{_dist_module_forward.1} parent=1 // loop_header_branch
      %12 = sbr.rel (%p10) target = $region8
    $region5: #{_dist_module_forward.1} parent=1 // loop_body
      %s14 = ssub.s32 %s9, 1
      %s15 = ssub.s32 %s9, 2
      %s22 = sadd.s32 1, %s17
      %p23 = scmp.ge.s32.totalorder %s22, 1
      %s24 = scalar_select %p23, 0, %s22
      %s25 = sadd.s32 1, %s16
      %s26 = scalar_select %p23, %s25, %s16
      %p27 = scmp.ge.s32.totalorder %s26, 2
      %s28 = scalar_select %p27, 0, %s26
      %s30 = sadd.s32 %s29, 1
      %p33 = scmp.eq.s32.totalorder %s9, 1
      %p34 = scmp.ne.s32.totalorder %s29, %s31
      %p35 = scmp.eq.s32.totalorder %s9, 0
      %p36 = por %p34, %p35
      %p37 = scmp.ne.s32.totalorder %s29, %s31
      %p38 = scmp.eq.s32.totalorder %s14, 1
      %p39 = por %p37, %p38
      %p40 = scmp.ne.s32.totalorder %s31, %s32
      %p41 = scmp.eq.s32.totalorder %s14, 0
      %p42 = por %p40, %p41
      %p43 = scmp.ne.s32.totalorder %s31, %s32
      %p44 = scmp.eq.s32.totalorder %s15, 1
      %p45 = por %p43, %p44
      %p47 = scmp.ne.s32.totalorder %s32, %s46
      %p48 = scmp.eq.s32.totalorder %s15, 0
      %p49 = por %p47, %p48
      %s50 = sadd.s32 %s16, %s17
      %s51 = sadd.s32 %s28, %s24
      %s52 = ssub.s32 %s50, %s51
      %p53 = scmp.eq.s32.totalorder %s52, 0
      %s55 = sadd.s32 %s54, 1
      %s56 = scalar_select %p53, %s54, %s55
      %p59 = pneg %p53
      %p60 = scmp.eq.s32.totalorder %s9, 1
      %p61 = por %p59, %p60
      %p62 = scmp.ne.s32.totalorder %s54, %s57
      %p63 = scmp.eq.s32.totalorder %s9, 0
      %p64 = por %p62, %p63
      %p65 = scmp.ne.s32.totalorder %s54, %s57
      %p66 = scmp.eq.s32.totalorder %s14, 1
      %p67 = por %p65, %p66
      %p68 = scmp.ne.s32.totalorder %s57, %s58
      %p69 = scmp.eq.s32.totalorder %s14, 0
      %p70 = por %p68, %p69
      %p71 = scmp.ne.s32.totalorder %s57, %s58
      %p72 = scmp.eq.s32.totalorder %s15, 1
      %p73 = por %p71, %p72
      %p75 = scmp.ne.s32.totalorder %s58, %s74
      %p76 = scmp.eq.s32.totalorder %s15, 0
      %p77 = por %p75, %p76
      %s79 = sadd.s32 %s78, 1
      %p82 = scmp.eq.s32.totalorder %s9, 1
      %p83 = scmp.ne.s32.totalorder %s78, %s80
      %p84 = scmp.eq.s32.totalorder %s9, 0
      %p85 = por %p83, %p84
      %p86 = scmp.ne.s32.totalorder %s78, %s80
      %p87 = scmp.eq.s32.totalorder %s14, 1
      %p88 = por %p86, %p87
      %p89 = scmp.ne.s32.totalorder %s80, %s81
      %p90 = scmp.eq.s32.totalorder %s14, 0
      %p91 = por %p89, %p90
      %p92 = scmp.ne.s32.totalorder %s80, %s81
      %p93 = scmp.eq.s32.totalorder %s15, 1
      %p94 = por %p92, %p93
      %p96 = scmp.ne.s32.totalorder %s81, %s95
      %p97 = scmp.eq.s32.totalorder %s15, 0
      %p98 = por %p96, %p97
      %s99 = ssub.s32 %s16, %s28
      %s100 = ssub.s32 %s17, %s24
      %s101 = sor.u32 %s99, %s100
      %p102 = scmp.eq.s32.totalorder %s101, 0
      %s104 = sadd.s32 %s103, 1
      %s105 = scalar_select %p102, %s103, %s104
      %p108 = pneg %p102
      %p109 = scmp.eq.s32.totalorder %s9, 1
      %p110 = por %p108, %p109
      %p111 = scmp.ne.s32.totalorder %s103, %s106
      %p112 = scmp.eq.s32.totalorder %s9, 0
      %p113 = por %p111, %p112
      %p114 = scmp.ne.s32.totalorder %s103, %s106
      %p115 = scmp.eq.s32.totalorder %s14, 1
      %p116 = por %p114, %p115
      %p117 = scmp.ne.s32.totalorder %s106, %s107
      %p118 = scmp.eq.s32.totalorder %s14, 0
      %p119 = por %p117, %p118
      %p120 = scmp.ne.s32.totalorder %s106, %s107
      %p121 = scmp.eq.s32.totalorder %s15, 1
      %p122 = por %p120, %p121
      %p124 = scmp.ne.s32.totalorder %s107, %s123
      %p125 = scmp.eq.s32.totalorder %s15, 0
      %p126 = por %p124, %p125
      %p127 = scmp.le.s32.totalorder 1, %s9
      %p128 = scmp.lt.s32.totalorder %s9, 3
      %p129 = pnand %p127, %p128
      %p130 = pneg %p129
      // Predicated region
      $region9: #{_dist_module_forward.1} parent=5 // pred_check
        _
      $region10: #{_dist_module_forward.1} parent=5 // pred_check_branch
        %132 = sbr.rel (%p129) target = $region12
      $region11: #{_dist_module_forward.1} parent=5 // pred_region
        %s133 = ssub.s32 %s9, 1
        // Predicated region
        $region13: #{_dist_module_forward.1} parent=11 // pred_check
          %p134 = pneg %p42
        $region14: #{_dist_module_forward.1} parent=11 // pred_check_branch
          %136 = sbr.rel (%p134) target = $region16
        $region15: #{_dist_module_forward.1} parent=11 // pred_region
          _
        $region16: #{_dist_module_forward.1} parent=11 // pred_fallthru
          _
        // Predicated region
        $region17: #{_dist_module_forward.1} parent=11 // pred_check
          %p137 = pneg %p91
        $region18: #{_dist_module_forward.1} parent=11 // pred_check_branch
          %139 = sbr.rel (%p137) target = $region20
        $region19: #{_dist_module_forward.1} parent=11 // pred_region
          _
        $region20: #{_dist_module_forward.1} parent=11 // pred_fallthru
          _
      $region12: #{_dist_module_forward.1} parent=5 // pred_fallthru
        _
      %p140 = scmp.lt.s32.totalorder %s9, 2
      // Predicated region
      $region21: #{_dist_module_forward.1} parent=5 // pred_check
        %p141 = pneg %p140
      $region22: #{_dist_module_forward.1} parent=5 // pred_check_branch
        %143 = sbr.rel (%p141) target = $region24
      $region23: #{_dist_module_forward.1} parent=5 // pred_region
        // Predicated region
        $region25: #{_dist_module_forward.1} parent=23 // pred_check
          %p144 = pneg %p64
        $region26: #{_dist_module_forward.1} parent=23 // pred_check_branch
          %146 = sbr.rel (%p144) target = $region28
        $region27: #{_dist_module_forward.1} parent=23 // pred_region
          %s147 = sand.u32 %s54, 1
          %s148 = sand.u32 %s54, 1
          %s149 = smul.addr %s148, 40
          %s150 = scalar_lea.vmem [#allocation2], %s149
          %s151 = sadd.s32 %s16, %s17
          %s152 = smul.u32 2, %s151
          %s153 = smul.addr %s152, 4
          %s154 = scalar_lea.vmem %s1, %s153
          // Predicated region
          $region29: #{_dist_module_forward.1} parent=27 // pred_check
            _
          $region30: #{_dist_module_forward.1} parent=27 // pred_check_branch
            %156 = sbr.rel (0) target = $region32
          $region31: #{_dist_module_forward.1} parent=27 // pred_region
            // Predicated region
            $region33: #{_dist_module_forward.1} parent=31 // pred_check
              _
            $region34: #{_dist_module_forward.1} parent=31 // pred_check_branch
              %158 = sbr.rel (0) target = $region36
            $region35: #{_dist_module_forward.1} parent=31 // pred_region
              // Predicated region
              $region48: #{_dist_module_forward.1} parent=35 // pred_check
                _
              $region49: #{_dist_module_forward.1} parent=35 // pred_check_branch
                %181 = sbr.rel (0) target = $region51
              $region50: #{_dist_module_forward.1} parent=35 // pred_region
                loop: start=0, step=1, limit=1
                $region52: #{_dist_module_forward.1} parent=50 // loop_pre_header
                  _
                $region53: #{_dist_module_forward.1} parent=50 // loop_header
                  %s183 = sphi 0, %s187
                  %p184 = scmp.ge.s32.totalorder %s183, 1
                  %s188 = sphi %s154, %s154
                  %s189 = sphi %s150, %s150
                $region54: #{_dist_module_forward.1} parent=50 // loop_header_branch
                  %186 = sbr.rel (%p184) target = $region58
                $region55: #{_dist_module_forward.1} parent=50 // loop_body
                  %v190 = vld [vmem:[%s188] sm:$0xff]
                  %191 = vst [vmem:[%s189] sm:$0xff] %v190
                  %v192 = vld [vmem:[%s188 + $0x10] sm:$0xff]
                  %193 = vst [vmem:[%s189 + $0x8] sm:$0xff] %v192
                  %v194 = vld [vmem:[%s188 + $0x20] sm:$0xff]
                  %195 = vst [vmem:[%s189 + $0x10] sm:$0xff] %v194
                  %v196 = vld [vmem:[%s188 + $0x30] sm:$0xff]
                  %197 = vst [vmem:[%s189 + $0x18] sm:$0xff] %v196
                  %v198 = vld [vmem:[%s188 + $0x40] sm:$0xff]
                  %199 = vst [vmem:[%s189 + $0x20] sm:$0xff] %v198
                $region56: #{_dist_module_forward.1} parent=50 // loop_footer
                  %s187 = sadd.s32 1, %s183
                $region57: #{_dist_module_forward.1} parent=50 // loop_footer_branch
                  %182 = sbr.rel target = $region53
                $region58: #{_dist_module_forward.1} parent=50 // loop_exit
                  _
              $region51: #{_dist_module_forward.1} parent=35 // pred_fallthru
                _
              // Predicated region
              $region59: #{_dist_module_forward.1} parent=35 // pred_check
                _
              $region60: #{_dist_module_forward.1} parent=35 // pred_check_branch
                %201 = sbr.rel target = $region62
              $region61: #{_dist_module_forward.1} parent=35 // pred_region
                _
              $region62: #{_dist_module_forward.1} parent=35 // pred_fallthru
                _
            $region36: #{_dist_module_forward.1} parent=31 // pred_fallthru
              _
            // Predicated region
            $region37: #{_dist_module_forward.1} parent=31 // pred_check
              _
            $region38: #{_dist_module_forward.1} parent=31 // pred_check_branch
              %160 = sbr.rel target = $region40
            $region39: #{_dist_module_forward.1} parent=31 // pred_region
              loop: start=0, step=1, limit=1
              $region41: #{_dist_module_forward.1} parent=39 // loop_pre_header
                _
              $region42: #{_dist_module_forward.1} parent=39 // loop_header
                %s163 = sphi 0, %s167
                %p164 = scmp.ge.s32.totalorder %s163, 1
                %s168 = sphi %s154, %s154
                %s169 = sphi %s150, %s150
              $region43: #{_dist_module_forward.1} parent=39 // loop_header_branch
                %166 = sbr.rel (%p164) target = $region47
              $region44: #{_dist_module_forward.1} parent=39 // loop_body
                %v170 = vld [vmem:[%s168] sm:$0xff]
                %171 = vst [vmem:[%s169] sm:$0xff] %v170
                %v172 = vld [vmem:[%s168 + $0x10] sm:$0xff]
                %173 = vst [vmem:[%s169 + $0x8] sm:$0xff] %v172
                %v174 = vld [vmem:[%s168 + $0x20] sm:$0xff]
                %175 = vst [vmem:[%s169 + $0x10] sm:$0xff] %v174
                %v176 = vld [vmem:[%s168 + $0x30] sm:$0xff]
                %177 = vst [vmem:[%s169 + $0x18] sm:$0xff] %v176
                %v178 = vld [vmem:[%s168 + $0x40] sm:$0xff]
                %179 = vst [vmem:[%s169 + $0x20] sm:$0xff] %v178
              $region45: #{_dist_module_forward.1} parent=39 // loop_footer
                %s167 = sadd.s32 1, %s163
              $region46: #{_dist_module_forward.1} parent=39 // loop_footer_branch
                %162 = sbr.rel target = $region42
              $region47: #{_dist_module_forward.1} parent=39 // loop_exit
                _
            $region40: #{_dist_module_forward.1} parent=31 // pred_fallthru
              _
          $region32: #{_dist_module_forward.1} parent=27 // pred_fallthru
            _
          %202 = vnop
        $region28: #{_dist_module_forward.1} parent=23 // pred_fallthru
          _
      $region24: #{_dist_module_forward.1} parent=5 // pred_fallthru
        _
      %p203 = scmp.le.s32.totalorder 1, %s9
      %p204 = scmp.lt.s32.totalorder %s9, 3
      %p205 = pnand %p203, %p204
      %p206 = pneg %p205
      // Predicated region
      $region63: #{_dist_module_forward.1} parent=5 // pred_check
        _
      $region64: #{_dist_module_forward.1} parent=5 // pred_check_branch
        %208 = sbr.rel (%p205) target = $region66
      $region65: #{_dist_module_forward.1} parent=5 // pred_region
        %s209 = ssub.s32 %s9, 1
        %s210 = sand.u32 %s57, 1
        %s211 = sand.u32 %s57, 1
        %s212 = smul.addr %s211, 40
        %s213 = scalar_lea.vmem [#allocation2], %s212
        // Predicated region
        $region67: #{_dist_module_forward.1} parent=65 // pred_check
          %p214 = pneg %p70
        $region68: #{_dist_module_forward.1} parent=65 // pred_check_branch
          %216 = sbr.rel (%p214) target = $region70
        $region69: #{_dist_module_forward.1} parent=65 // pred_region
          _
        $region70: #{_dist_module_forward.1} parent=65 // pred_fallthru
          _
        %p217 = pneg %p42
        %p218 = pneg %p39
        %s219 = sand.u32 %s57, 1
        %s220 = sand.u32 %s57, 1
        %s221 = smul.addr %s220, 40
        %s222 = scalar_lea.vmem [#allocation2], %s221
        %p223 = pneg %p70
        %p224 = pneg %p67
        %p225 = pneg %p91
        %p226 = pneg %p88
        %p227 = pneg %p119
        %p228 = pneg %p116
        %s229 = smul.u32 2, %s19
        %p230 = scmp.lt.s32.totalorder %s18, 1
        %s231 = scalar_select %p230, %s18, 1
        %p232 = scmp.lt.s32.totalorder %s229, 1
        %s233 = scalar_select %p232, %s229, 1
        %s234 = smul.addr %s231, 2
        %s235 = sadd.s32 %s233, %s234
        %s236 = smul.addr %s235, 4
        %s237 = scalar_lea.vmem %s3, %s236
        %s238 = sadd.s32 %s18, %s19
        %s239 = smul.u32 2, %s238
        %s240 = smul.u32 2, %s19
        %p241 = scmp.lt.s32.totalorder %s18, 1
        %s242 = scalar_select %p241, %s18, 1
        %p243 = scmp.lt.s32.totalorder %s240, 1
        %s244 = scalar_select %p243, %s240, 1
        %s245 = smul.addr %s242, 2
        %s246 = sadd.s32 %s244, %s245
        %s247 = smul.addr %s246, 4
        %s248 = scalar_lea.vmem %s3, %s247
        %s249 = smul.u32 2, %s19
        %v251 = vld [vmem:[%s0] sm:$0xf]
        %v252 = vld [vmem:[%s213] sm:$0xff]
        %v253 = vld [vmem:[%s213 + $0x8] sm:$0xff]
        %v254 = vld [vmem:[%s213 + $0x10] sm:$0xff]
        %v255 = vld [vmem:[%s213 + $0x18] sm:$0xff]
        %v256 = vld [vmem:[%s213 + $0x20] sm:$0x33]
        %v257 = vld [vmem:[%s2] sm:$0xff]
        %259 = vset.pattern.permute.xlu0 0
        %260 = vperm.xlu0 %259, %v257
        %v261 = vpop.permute.xlu0 %260
        %v268 = vunpack.c.l.b16 %v252
        %v269 = vunpack.c.h.b16 %v252
        %v270 = vunpack.c.l.b16 %v253
        %v271 = vunpack.c.h.b16 %v253
        %v272 = vunpack.c.l.b16 %v254
        %v273 = vunpack.c.h.b16 %v254
        %v274 = vunpack.c.l.b16 %v255
        %v275 = vunpack.c.h.b16 %v255
        %v276 = vunpack.c.l.b16 %v256
        %v277 = vunpack.c.h.b16 %v256
        %v278 = vpack.c.b16 %v270, %v268
        %v279 = vpack.c.b16 %v271, %v269
        %v280 = vpack.c.b16 %v274, %v272
        %v281 = vpack.c.b16 %v275, %v273
        %v282 = vpack.c.b16 %v276, %v276
        %v283 = vpack.c.b16 %v277, %v277
        %vm288 = vcmask 293888
        %v290 = vsel %vm288, %v251, 0
        %vm292 = vcmask 1041408
        %v294 = vsel %vm292, %v282, 0
        %v297 = vsel %vm292, %v283, 0
        %299 = vmatprep.subr.bf16.mxu0 %v279
        %300 = vmatpush1.bf16.msra.mxu0 %v278
        %301 = vmatprep.subr.bf16.mxu0 %v281
        %302 = vmatpush1.bf16.msra.mxu0 %v280
        %303 = vmatprep.subr.bf16.mxu0 %v297
        %304 = vmatpush1.bf16.msra.mxu0 %v294
        %305 = vmatprep.subr.bf16.mxu0 0
        %306 = vmatpush1.bf16.msra.mxu0 0
        %307 = vmatprep.subr.bf16.mxu0 0
        %308 = vmatpush1.bf16.msra.mxu0 0
        %309 = vmatprep.subr.bf16.mxu0 0
        %310 = vmatpush1.bf16.msra.mxu0 0
        %311 = vmatprep.subr.bf16.mxu0 0
        %312 = vmatpush1.bf16.msra.mxu0 0
        %313 = vmatprep.subr.bf16.mxu0 0
        %314 = vmatpush1.bf16.msra.mxu0 0
        %315 = vmatprep.subr.bf16.mxu0 0
        %316 = vmatpush1.bf16.msra.mxu0 0
        %317 = vmatprep.subr.bf16.mxu0 0
        %318 = vmatpush1.bf16.msra.mxu0 0
        %319 = vmatprep.subr.bf16.mxu0 0
        %320 = vmatpush1.bf16.msra.mxu0 0
        %321 = vmatprep.subr.bf16.mxu0 0
        %322 = vmatpush1.bf16.msra.mxu0 0
        %323 = vmatprep.subr.bf16.mxu0 0
        %324 = vmatpush1.bf16.msra.mxu0 0
        %325 = vmatprep.subr.bf16.mxu0 0
        %326 = vmatpush1.bf16.msra.mxu0 0
        %327 = vmatprep.subr.bf16.mxu0 0
        %328 = vmatpush1.bf16.msra.mxu0 0
        %329 = vmatprep.subr.bf16.mxu0 0
        %330 = vmatpush1.bf16.msra.mxu0 0
        %331 = vmatprep.mubr.bf16.mxu0 0
        %332 = vmatmul.mubr.bf16.gmra.mrb[0].mxu0 %v290
        %v333 = vpop.f32.mrb[0].mxu0
        %v334 = vadd.f32 %v261, %v333
        %v335 = vpop.f32.mrb[0].mxu0
        %v336 = vadd.f32 %v261, %v335
        %v337 = vpop.f32.mrb[0].mxu0
        %v338 = vpop.f32.mrb[0].mxu0
        %339 = vdwg.mxu0
        %v340 = vmax.f32 %v334, 0.0
        %v341 = vmax.f32 %v336, 0.0
        %v342 = vpack.c.bf16 %v340, %v340
        %v343 = vpack.c.bf16 %v341, %v341
        %v346 = vunpack.c.l.b16 %v342
        %v347 = vunpack.c.l.b16 %v343
        %v348 = vpack.c.b16 %v347, %v346
        %350 = vst [vmem:[%s248] sm:$0xff] %v348
        %s351 = smul.u32 2, %s19
        %p352 = scmp.lt.s32.totalorder %s18, 1
        %s353 = scalar_select %p352, %s18, 1
        %p354 = scmp.lt.s32.totalorder %s351, 1
        %s355 = scalar_select %p354, %s351, 1
        %s356 = smul.addr %s353, 2
        %s357 = sadd.s32 %s355, %s356
        %s358 = smul.addr %s357, 4
        %s359 = scalar_lea.vmem %s3, %s358
        // Predicated region
        $region71: #{_dist_module_forward.1} parent=65 // pred_check
          %p360 = pneg %p116
        $region72: #{_dist_module_forward.1} parent=65 // pred_check_branch
          %362 = sbr.rel (%p360) target = $region74
        $region73: #{_dist_module_forward.1} parent=65 // pred_region
          %s363 = smul.u32 2, %s19
        $region74: #{_dist_module_forward.1} parent=65 // pred_fallthru
          _
      $region66: #{_dist_module_forward.1} parent=5 // pred_fallthru
        _
      %p364 = scmp.le.s32.totalorder 2, %s9
      // Predicated region
      $region75: #{_dist_module_forward.1} parent=5 // pred_check
        %p365 = pneg %p364
      $region76: #{_dist_module_forward.1} parent=5 // pred_check_branch
        %367 = sbr.rel (%p365) target = $region78
      $region77: #{_dist_module_forward.1} parent=5 // pred_region
        %s368 = ssub.s32 %s9, 2
        // Predicated region
        $region79: #{_dist_module_forward.1} parent=77 // pred_check
          %p369 = pneg %p122
        $region80: #{_dist_module_forward.1} parent=77 // pred_check_branch
          %371 = sbr.rel (%p369) target = $region82
        $region81: #{_dist_module_forward.1} parent=77 // pred_region
          %s372 = smul.u32 2, %s21
          %p373 = scmp.lt.s32.totalorder %s20, 1
          %s374 = scalar_select %p373, %s20, 1
          %p375 = scmp.lt.s32.totalorder %s372, 1
          %s376 = scalar_select %p375, %s372, 1
          %s377 = smul.addr %s374, 2
          %s378 = sadd.s32 %s376, %s377
          %s379 = smul.addr %s378, 4
          %s380 = scalar_lea.vmem %s3, %s379
        $region82: #{_dist_module_forward.1} parent=77 // pred_fallthru
          _
      $region78: #{_dist_module_forward.1} parent=5 // pred_fallthru
        _
    $region6: #{_dist_module_forward.1} parent=1 // loop_footer
      %s13 = sadd.s32 1, %s9
    $region7: #{_dist_module_forward.1} parent=1 // loop_footer_branch
      %8 = sbr.rel target = $region3
    $region8: #{_dist_module_forward.1} parent=1 // loop_exit
      _

</llo_original>
